<compile_context>
chip_gen: v7x
topology: tpu7x:2x2x1
jax: 0.10.0
libtpu: 0.0.40
codegen_flags: <defaults>
</compile_context>

<pallas_src>
import functools

import jax
import jax.numpy as jnp
from jax import lax
from jax.experimental import pallas as pl
from jax.experimental.pallas import tpu as pltpu

# config values from the Bengali.AI grapheme task (config.*)
N_GRAPHEME_ROOTS = 168
N_VOWEL_DIACRITICS = 11
N_CONSONANT_DIACRITICS = 7
N_TOTAL = N_GRAPHEME_ROOTS + N_VOWEL_DIACRITICS + N_CONSONANT_DIACRITICS  # 186


def _round_up(x, m):
    return ((x + m - 1) // m) * m


def classifier_kernel(x_ref, w_ref, b_ref, out_ref, pooled_ref, *, row_group):
    """One batch tile.

    x_ref:      (TB, C, HW)     input dtype (f32/bf16), native NCHW layout
    w_ref:      (C, OUT_PAD)    bf16  fused heads, pre-scaled by 1/HW
    b_ref:      (1, OUT_PAD)    f32   fused biases (zero padded)
    out_ref:    (TB, OUT_PAD)   f32
    pooled_ref: (TB, C)         f32   pooled rows (VMEM scratch, written once
                                      per row group, not per spatial position)
    """
    tb = x_ref.shape[0]
    n_groups = tb // row_group

    def body(g, carry):
        start = pl.multiple_of(g * row_group, row_group)
        # (G, C, HW): C on sublanes, HW on lanes -> lane-axis reduction.
        chunk = x_ref[pl.ds(start, row_group), :, :]
        pooled_ref[pl.ds(start, row_group), :] = jnp.sum(
            chunk.astype(jnp.float32), axis=-1)
        return carry

    unroll = n_groups if n_groups <= 4 else 4
    lax.fori_loop(0, n_groups, body, 0, unroll=unroll)

    # Pooled rows are (TB, C) with C lane-major: direct MXU LHS.
    out_ref[...] = (
        jnp.dot(pooled_ref[...].astype(jnp.bfloat16), w_ref[...],
                preferred_element_type=jnp.float32)
        + b_ref[...]
    )


def classifier_forward(x_nchw, params):
    """x_nchw: (B, C, H, W). Returns (grapheme, vowel, consonant) logits."""
    B, C, H, W = x_nchw.shape
    HW = H * W

    # Free view: collapse the two trailing (contiguous) spatial dims. No copy,
    # no transpose, no dtype cast -> the kernel reads x exactly once from HBM.
    x = x_nchw.reshape(B, C, HW)

    # --- fuse the three heads into one lane-dense matmul ------------------
    wg, bg = params["grapheme"]       # (C, 168), (1, 168)
    wv, bv = params["vowel"]          # (C, 11),  (1, 11)
    wc, bc = params["consonant"]      # (C, 7),   (1, 7)
    w_fused = jnp.concatenate([wg, wv, wc], axis=1).astype(jnp.float32)  # (C, 186)
    b_fused = jnp.concatenate([bg, bv, bc], axis=1).astype(jnp.float32)  # (1, 186)
    out_pad = _round_up(N_TOTAL, 128)                                    # 256
    # 1/HW folded into the weight; bf16 weights = single-pass MXU + half the
    # resident VMEM footprint.  Bias and accumulation stay f32.
    w_fused = (jnp.pad(w_fused, ((0, 0), (0, out_pad - N_TOTAL)))
               * (1.0 / HW)).astype(jnp.bfloat16)
    b_fused = jnp.pad(b_fused, ((0, 0), (0, out_pad - N_TOTAL)))

    # --- generation-aware batch tiling -------------------------------------
    try:
        info = pltpu.get_tpu_info()
        vmem_cap = int(getattr(info, "vmem_capacity_bytes", 64 << 20))
    except Exception:  # pragma: no cover - non-TPU fallback
        vmem_cap = 64 << 20

    elem_bytes = jnp.dtype(x.dtype).itemsize
    bytes_per_row = C * HW * elem_bytes
    x_budget = max(4 << 20, vmem_cap // 2)          # x double-buffer budget
    tb_cap = max(1, x_budget // (2 * bytes_per_row))

    if B <= 8:
        TB = B                                       # single block == full batch dim
    else:
        # Guarantee >= 2 (ideally 4) grid steps so v7x's two TensorCores get
        # work and the input DMA pipeline has something to overlap with.
        min_steps = 4 if B >= 32 else 2
        tb = min(tb_cap, max(8, B // min_steps))
        TB = max(8, (tb // 8) * 8)                   # output sublane alignment
    grid = (pl.cdiv(B, TB),)                         # ragged last tile: no x pad;
                                                     # garbage rows sliced off below.
    row_group = 8 if TB % 8 == 0 else TB

    vmem_need = (2 * TB * bytes_per_row              # x, double-buffered
                 + 2 * C * out_pad * 2               # fused W (bf16)
                 + 2 * out_pad * 4                   # fused bias
                 + 2 * TB * out_pad * 4              # output, double-buffered
                 + TB * C * 4)                       # pooled scratch
    vmem_limit = max(vmem_need + (4 << 20), 16 << 20)
    vmem_limit = int(min(vmem_limit, int(vmem_cap * 0.8)))  # headroom under physical cap

    kernel = functools.partial(classifier_kernel, row_group=row_group)

    fused_out = pl.pallas_call(
        kernel,
        out_shape=jax.ShapeDtypeStruct((B, out_pad), jnp.float32),
        grid_spec=pltpu.PrefetchScalarGridSpec(
            num_scalar_prefetch=0,
            grid=grid,
            in_specs=[
                pl.BlockSpec((TB, C, HW), lambda i: (i, 0, 0)),   # x tile (native layout)
                pl.BlockSpec((C, out_pad), lambda i: (0, 0)),     # fused W (resident)
                pl.BlockSpec((1, out_pad), lambda i: (0, 0)),     # fused b (resident)
            ],
            out_specs=pl.BlockSpec((TB, out_pad), lambda i: (i, 0)),
            scratch_shapes=[pltpu.VMEM((TB, C), jnp.float32)],
        ),
        compiler_params=pltpu.CompilerParams(
            dimension_semantics=("parallel",),
            vmem_limit_bytes=vmem_limit,
        ),
    )(x, w_fused, b_fused)

    grapheme = fused_out[:, :N_GRAPHEME_ROOTS]
    vowel = fused_out[:, N_GRAPHEME_ROOTS:N_GRAPHEME_ROOTS + N_VOWEL_DIACRITICS]
    consonant = fused_out[:, N_GRAPHEME_ROOTS + N_VOWEL_DIACRITICS:N_TOTAL]
    return grapheme, vowel, consonant


def init_params(key, in_features):
    """Deterministic init mimicking nn.Linear default (uniform +/- 1/sqrt(fan_in))."""
    def linear(k, out_f):
        kw, kb = jax.random.split(k)
        bound = 1.0 / jnp.sqrt(jnp.float32(in_features))
        # stored pre-transposed: (in_features, out_f)
        w = jax.random.uniform(kw, (in_features, out_f), jnp.float32, -bound, bound)
        b = jax.random.uniform(kb, (1, out_f), jnp.float32, -bound, bound)
        return w, b

    kg, kv, kc = jax.random.split(key, 3)
    return {
        "grapheme": linear(kg, N_GRAPHEME_ROOTS),
        "vowel": linear(kv, N_VOWEL_DIACRITICS),
        "consonant": linear(kc, N_CONSONANT_DIACRITICS),
    }


if __name__ == "__main__":
    key = jax.random.PRNGKey(0)
    k_x, k_p = jax.random.split(key)

    B, C, H, W = 2, 32, 16, 16      # batch=2, in_features=32, spatial=16x16
    x = jax.random.normal(k_x, (B, C, H, W), jnp.float32)
    params = init_params(k_p, C)

    grapheme, vowel, consonant = classifier_forward(x, params)
    jax.block_until_ready((grapheme, vowel, consonant))

    # sanity check vs pure-JAX f32 reference (kernel pools in f32 and only the
    # fused head weights / pooled LHS are bf16 at the matmul)
    pooled = x.mean(axis=(2, 3))
    ref_g = pooled @ params["grapheme"][0] + params["grapheme"][1]
    ref_v = pooled @ params["vowel"][0] + params["vowel"][1]
    ref_c = pooled @ params["consonant"][0] + params["consonant"][1]
    assert grapheme.shape == (B, N_GRAPHEME_ROOTS)
    assert vowel.shape == (B, N_VOWEL_DIACRITICS)
    assert consonant.shape == (B, N_CONSONANT_DIACRITICS)
    assert jnp.allclose(grapheme, ref_g, atol=5e-3, rtol=1e-2)
    assert jnp.allclose(vowel, ref_v, atol=5e-3, rtol=1e-2)
    assert jnp.allclose(consonant, ref_c, atol=5e-3, rtol=1e-2)

    print("KERNEL_OK")
</pallas_src>

<mosaic_0001>
module attributes {stable_mosaic.version = 11 : i64} {
  func.func @classifier_kernel(%arg0: i32, %arg1: memref<2x32x256xf32, #tpu.memory_space<vmem>>, %arg2: memref<32x256xbf16, #tpu.memory_space<vmem>>, %arg3: memref<1x256xf32, #tpu.memory_space<vmem>>, %arg4: memref<2x256xf32, #tpu.memory_space<vmem>>, %arg5: memref<2x32xf32, #tpu.memory_space<vmem>>) attributes {dimension_semantics = [#tpu.dimension_semantics<parallel>], iteration_bounds = array<i64: 1>, scalar_prefetch = 0 : i64, scratch_operands = 1 : i64, tpu.core_type = #tpu.core_type<tc>, window_params = [{transform_indices = @transform_0, window_bounds = array<i64: 2, 32, 256>}, {pipeline_mode = #tpu.pipeline_mode<synchronous>, transform_indices = @transform_1, window_bounds = array<i64: 32, 256>}, {pipeline_mode = #tpu.pipeline_mode<synchronous>, transform_indices = @transform_2, window_bounds = array<i64: 1, 256>}, {transform_indices = @transform_3, window_bounds = array<i64: 2, 256>}]} {
    %c0_i32 = arith.constant 0 : i32
    %c2_i32 = arith.constant 2 : i32
    %0 = arith.muli %c0_i32, %c2_i32 : i32
    %1 = tpu.assume_multiple %0, 2 : i32
    %2 = arith.index_cast %1 : i32 to index
    %c0 = arith.constant 0 : index
    %c0_0 = arith.constant 0 : index
    %3 = vector.load %arg1[%2, %c0, %c0_0] : memref<2x32x256xf32, #tpu.memory_space<vmem>>, vector<2x32x256xf32>
    %cst = arith.constant dense<0.000000e+00> : vector<2x32xf32>
    %4 = vector.multi_reduction <add>, %3, %cst [2] : vector<2x32x256xf32> to vector<2x32xf32>
    %5 = arith.index_cast %1 : i32 to index
    %c0_1 = arith.constant 0 : index
    %6 = vector.load %arg5[%5, %c0_1] : memref<2x32xf32, #tpu.memory_space<vmem>>, vector<2x32xf32>
    tpu.vector_store %arg5[%5, %c0_1], %4 {strides = array<i32>} : memref<2x32xf32, #tpu.memory_space<vmem>>, vector<2x32xf32>,
    %c1_i32 = arith.constant 1 : i32
    %c0_2 = arith.constant 0 : index
    %c0_3 = arith.constant 0 : index
    %7 = vector.load %arg5[%c0_2, %c0_3] : memref<2x32xf32, #tpu.memory_space<vmem>>, vector<2x32xf32>
    %8 = arith.truncf %7 : vector<2x32xf32> to vector<2x32xbf16>
    %c0_4 = arith.constant 0 : index
    %c0_5 = arith.constant 0 : index
    %9 = vector.load %arg2[%c0_4, %c0_5] : memref<32x256xbf16, #tpu.memory_space<vmem>>, vector<32x256xbf16>
    %cst_6 = arith.constant dense<0.000000e+00> : vector<2x256xf32>
    %10 = tpu.matmul %8, %9, %cst_6 {dimension_numbers = #tpu.dot_dimension_numbers<[1], [0], [0], [1], [0, 0, 1, 1], [], []>} : vector<2x32xbf16>, vector<32x256xbf16>, vector<2x256xf32> -> vector<2x256xf32>
    %c0_7 = arith.constant 0 : index
    %c0_8 = arith.constant 0 : index
    %11 = vector.load %arg3[%c0_7, %c0_8] : memref<1x256xf32, #tpu.memory_space<vmem>>, vector<1x256xf32>
    %12 = vector.broadcast %11 : vector<1x256xf32> to vector<2x256xf32>
    %13 = arith.addf %10, %12 : vector<2x256xf32>
    %c0_9 = arith.constant 0 : index
    %c0_10 = arith.constant 0 : index
    %14 = vector.load %arg4[%c0_9, %c0_10] : memref<2x256xf32, #tpu.memory_space<vmem>>, vector<2x256xf32>
    tpu.vector_store %arg4[%c0_9, %c0_10], %13 {strides = array<i32>} : memref<2x256xf32, #tpu.memory_space<vmem>>, vector<2x256xf32>,
    return
  }
  func.func @transform_0(%arg0: i32) -> (i32, i32, i32) {
    %c0_i32 = arith.constant 0 : i32
    %c0_i32_0 = arith.constant 0 : i32
    %c0_i32_1 = arith.constant 0 : i32
    return %arg0, %c0_i32, %c0_i32_0 : i32, i32, i32
  }
  func.func @transform_1(%arg0: i32) -> (i32, i32) {
    %c0_i32 = arith.constant 0 : i32
    %c0_i32_0 = arith.constant 0 : i32
    %c0_i32_1 = arith.constant 0 : i32
    return %c0_i32, %c0_i32_0 : i32, i32
  }
  func.func @transform_2(%arg0: i32) -> (i32, i32) {
    %c0_i32 = arith.constant 0 : i32
    %c0_i32_0 = arith.constant 0 : i32
    %c0_i32_1 = arith.constant 0 : i32
    return %c0_i32, %c0_i32_0 : i32, i32
  }
  func.func @transform_3(%arg0: i32) -> (i32, i32) {
    %c0_i32 = arith.constant 0 : i32
    %c0_i32_0 = arith.constant 0 : i32
    return %arg0, %c0_i32 : i32, i32
  }
}

</mosaic_0001>

<llo_original>
// kernel: tpu_custom_call.1
$region0: #{tpu_custom_call.1}
  #allocation0 [shape = 'u32[]', space=smem, size = 0x4, offset = 0x4, fixed_abs, tag = 'smem constant byte address 0x4 - core index']
  #allocation1 [shape = 'u32[144,128]{1,0:T(1,128)}', space=vmem, size = 0x12000, scoped, tag = 'internal scratch']
  #allocation2 [shape = 'f32[2,32]{1,0:T(2,128)}', space=vmem, size = 0x400, scoped, tag = 'scratch operand']
  %s0 = inlined_call_operand.hbm [shape: f32[2,32,256], index: 0, kind: input, shape index: {}]
  %s1 = inlined_call_operand.hbm [shape: bf16[32,256], index: 1, kind: input, shape index: {}]
  %s2 = inlined_call_operand.vmem [shape: f32[1,256], index: 2, kind: input, shape index: {}]
  %s3 = inlined_call_operand.hbm [shape: f32[2,256], index: 3, kind: output, shape index: {}]
  %s4 = sld [smem:[#allocation0]]
  $region30: #{tpu_custom_call.1} parent=0
    _
  %s6 = ssub.s32 1, %s4
  %s7 = scalar_select 0, %s6, %s4
  $region1: #{tpu_custom_call.1} parent=0
    #allocation3 [shape = 'u8[65536]{0}', space=vmem, size = 0x10000, scoped, tag = 'input window, operand 0, single buffered']
    #allocation4 [shape = 's32[1]{0}', space=sflag, size = 0x4, scoped, tag = 'scoped memory for tpu_custom_call.1']
    #allocation5 [shape = 's32[1]{0}', space=sflag, size = 0x4, scoped, tag = 'scoped memory for tpu_custom_call.1']
    #allocation6 [shape = 'u8[16384]{0}', space=vmem, size = 0x4000, scoped, tag = 'input window, operand 1, single buffered']
    #allocation7 [shape = 's32[1]{0}', space=sflag, size = 0x4, scoped, tag = 'scoped memory for tpu_custom_call.1']
    #allocation8 [shape = 'u8[2048]{0}', space=vmem, size = 0x800, scoped, tag = 'output window, operand 0, single buffered']
    %8 = vsyncpa [#allocation4], 0
    %9 = vsyncpa [#allocation7], 0
    %10 = vsyncpa [#allocation5], 0
    // Predicated region
    $region2: #{tpu_custom_call.1} parent=1 // pred_check
      _
    $region3: #{tpu_custom_call.1} parent=1 // pred_check_branch
      %12 = sbr.rel (0) target = $region5
    $region4: #{tpu_custom_call.1} parent=1 // pred_region
      %s14 = ssub.s32 2048, 2048
      %15 = vsyncadd [#allocation4], %s14
      %s16 = sshll.u32 [#allocation3], 4
      %s17 = int_to_ptr.vmem [resolvable:$true] %s16
      %22 = dma.hbm_to_vmem [thread:$0]  %s0, 2048, %s17, [#allocation4], 256, 256, 16
    $region5: #{tpu_custom_call.1} parent=1 // pred_fallthru
      _
    // Predicated region
    $region6: #{tpu_custom_call.1} parent=1 // pred_check
      _
    $region7: #{tpu_custom_call.1} parent=1 // pred_check_branch
      %24 = sbr.rel (0) target = $region9
    $region8: #{tpu_custom_call.1} parent=1 // pred_region
      %s26 = ssub.s32 512, 512
      %27 = vsyncadd [#allocation7], %s26
      %s28 = sshll.u32 [#allocation6], 4
      %s29 = int_to_ptr.vmem [resolvable:$true] %s28
      %34 = dma.hbm_to_vmem [thread:$0]  %s1, 512, %s29, [#allocation7], 128, 128, 8
    $region9: #{tpu_custom_call.1} parent=1 // pred_fallthru
      _
    // Predicated region
    $region10: #{tpu_custom_call.1} parent=1 // pred_check
      _
    $region11: #{tpu_custom_call.1} parent=1 // pred_check_branch
      %36 = sbr.rel (0) target = $region13
    $region12: #{tpu_custom_call.1} parent=1 // pred_region
      _
    $region13: #{tpu_custom_call.1} parent=1 // pred_fallthru
      _
    // Predicated region
    $region14: #{tpu_custom_call.1} parent=1 // pred_check
      _
    $region15: #{tpu_custom_call.1} parent=1 // pred_check_branch
      %38 = sbr.rel (0) target = $region17
    $region16: #{tpu_custom_call.1} parent=1 // pred_region
      %39 = dma.done [#allocation4], 2048
    $region17: #{tpu_custom_call.1} parent=1 // pred_fallthru
      _
    // Predicated region
    $region18: #{tpu_custom_call.1} parent=1 // pred_check
      _
    $region19: #{tpu_custom_call.1} parent=1 // pred_check_branch
      %41 = sbr.rel (0) target = $region21
    $region20: #{tpu_custom_call.1} parent=1 // pred_region
      %42 = dma.done [#allocation7], 512
    $region21: #{tpu_custom_call.1} parent=1 // pred_fallthru
      _
    %s44 = smul.u32 0, 8
    %s45 = smul.addr %s44, 8
    %s46 = scalar_lea.vmem [#allocation3], %s45
    %v47 = vld [vmem:[%s46] sm:$0xff]
    %v48 = vld [vmem:[%s46 + $0x8] sm:$0xff]
    %v49 = vld [vmem:[%s46 + $0x10] sm:$0xff]
    %v50 = vld [vmem:[%s46 + $0x18] sm:$0xff]
    %v51 = vld [vmem:[%s46 + $0x20] sm:$0xff]
    %v52 = vld [vmem:[%s46 + $0x28] sm:$0xff]
    %v53 = vld [vmem:[%s46 + $0x30] sm:$0xff]
    %v54 = vld [vmem:[%s46 + $0x38] sm:$0xff]
    %v55 = vld [vmem:[%s46 + $0x40] sm:$0xff]
    %v56 = vld [vmem:[%s46 + $0x48] sm:$0xff]
    %v57 = vld [vmem:[%s46 + $0x50] sm:$0xff]
    %v58 = vld [vmem:[%s46 + $0x58] sm:$0xff]
    %v59 = vld [vmem:[%s46 + $0x60] sm:$0xff]
    %v60 = vld [vmem:[%s46 + $0x68] sm:$0xff]
    %v61 = vld [vmem:[%s46 + $0x70] sm:$0xff]
    %v62 = vld [vmem:[%s46 + $0x78] sm:$0xff]
    %v63 = vadd.f32 %v47, %v48
    %64 = vadd.xlane.f32.xlu0 %v63
    %v65 = vpop.xlane.xlu0 %64
    %v66 = vadd.f32 %v49, %v50
    %67 = vadd.xlane.f32.xlu0 %v66
    %v68 = vpop.xlane.xlu0 %67
    %v69 = vadd.f32 %v51, %v52
    %70 = vadd.xlane.f32.xlu0 %v69
    %v71 = vpop.xlane.xlu0 %70
    %v72 = vadd.f32 %v53, %v54
    %73 = vadd.xlane.f32.xlu0 %v72
    %v74 = vpop.xlane.xlu0 %73
    %v75 = vadd.f32 %v55, %v56
    %76 = vadd.xlane.f32.xlu0 %v75
    %v77 = vpop.xlane.xlu0 %76
    %v78 = vadd.f32 %v57, %v58
    %79 = vadd.xlane.f32.xlu0 %v78
    %v80 = vpop.xlane.xlu0 %79
    %v81 = vadd.f32 %v59, %v60
    %82 = vadd.xlane.f32.xlu0 %v81
    %v83 = vpop.xlane.xlu0 %82
    %v84 = vadd.f32 %v61, %v62
    %85 = vadd.xlane.f32.xlu0 %v84
    %v86 = vpop.xlane.xlu0 %85
    %v95 = vlaneseq
    %v96 = vand.u32 %v95, 127
    %v97 = vlaneseq
    %v98 = vshrl.u32 %v97, 7
    %v99 = vsub.s32 %v96, %v98
    %v100 = vrot.slane %v65, %v99
    %v101 = vadd.s32 %v96, 4294967288
    %v102 = vlaneseq
    %v103 = vshrl.u32 %v102, 7
    %v104 = vsub.s32 %v101, %v103
    %v105 = vrot.slane %v68, %v104
    %vm106 = vcmask 130112
    %v107 = vsel %vm106, %v105, %v100
    %v108 = vadd.s32 %v96, 4294967280
    %v109 = vlaneseq
    %v110 = vshrl.u32 %v109, 7
    %v111 = vsub.s32 %v108, %v110
    %v112 = vrot.slane %v71, %v111
    %vm113 = vcmask 195712
    %v114 = vsel %vm113, %v112, %v107
    %v115 = vadd.s32 %v96, 4294967272
    %v116 = vlaneseq
    %v117 = vshrl.u32 %v116, 7
    %v118 = vsub.s32 %v115, %v117
    %v119 = vrot.slane %v74, %v118
    %vm120 = vcmask 261312
    %v121 = vsel %vm120, %v119, %v114
    %v122 = vlaneseq
    %v123 = vshrl.u32 %v122, 7
    %v124 = vsub.s32 %v96, %v123
    %v125 = vrot.slane %v77, %v124
    %v126 = vlaneseq
    %v127 = vshrl.u32 %v126, 7
    %v128 = vsub.s32 %v101, %v127
    %v129 = vrot.slane %v80, %v128
    %v130 = vsel %vm106, %v129, %v125
    %v131 = vlaneseq
    %v132 = vshrl.u32 %v131, 7
    %v133 = vsub.s32 %v108, %v132
    %v134 = vrot.slane %v83, %v133
    %v135 = vsel %vm113, %v134, %v130
    %v136 = vlaneseq
    %v137 = vshrl.u32 %v136, 7
    %v138 = vsub.s32 %v115, %v137
    %v139 = vrot.slane %v86, %v138
    %v140 = vsel %vm120, %v139, %v135
    %vm141 = vcmask 1041409
    %v142 = vsel %vm141, %v140, %v121
    %vm144 = vcmask 254976
    %145 = vst.msk [vmem:[#allocation2] sm:$0x3] %vm144, %v142
    %v146 = vld [vmem:[#allocation2] sm:$0x3]
    %v147 = vpack.c.bf16 %v146, %v146
    %v148 = vld [vmem:[#allocation6] sm:$0xff]
    %v149 = vld [vmem:[#allocation6 + $0x8] sm:$0xff]
    %v150 = vld [vmem:[#allocation6 + $0x10] sm:$0xff]
    %v151 = vld [vmem:[#allocation6 + $0x18] sm:$0xff]
    %v152 = vld [vmem:[%s2] sm:$0x3]
    %v154 = vlaneseq
    %v155 = vshrl.u32 %v154, 7
    %v156 = vsub.s32 0, %v155
    %v157 = vrot.slane %v152, %v156
    %v158 = vlaneseq
    %v159 = vshrl.u32 %v158, 7
    %v160 = vsub.s32 1, %v159
    %v161 = vrot.slane %v152, %v160
    %v168 = vunpack.c.l.b16 %v148
    %v169 = vunpack.c.h.b16 %v148
    %v170 = vunpack.c.l.b16 %v149
    %v171 = vunpack.c.h.b16 %v149
    %v172 = vunpack.c.l.b16 %v150
    %v173 = vunpack.c.h.b16 %v150
    %v174 = vunpack.c.l.b16 %v151
    %v175 = vunpack.c.h.b16 %v151
    %v176 = vpack.c.b16 %v170, %v168
    %v177 = vpack.c.b16 %v171, %v169
    %v178 = vpack.c.b16 %v174, %v172
    %v179 = vpack.c.b16 %v175, %v173
    %vm184 = vcmask 261120
    %v186 = vsel %vm184, %v147, 0
    %188 = vmatprep.subr.bf16.mxu0 %v177
    %189 = vmatpush1.bf16.msra.mxu0 %v176
    %190 = vmatprep.subr.bf16.mxu0 %v179
    %191 = vmatpush1.bf16.msra.mxu0 %v178
    %192 = vmatprep.subr.bf16.mxu0 0
    %193 = vmatpush1.bf16.msra.mxu0 0
    %194 = vmatprep.subr.bf16.mxu0 0
    %195 = vmatpush1.bf16.msra.mxu0 0
    %196 = vmatprep.subr.bf16.mxu0 0
    %197 = vmatpush1.bf16.msra.mxu0 0
    %198 = vmatprep.subr.bf16.mxu0 0
    %199 = vmatpush1.bf16.msra.mxu0 0
    %200 = vmatprep.subr.bf16.mxu0 0
    %201 = vmatpush1.bf16.msra.mxu0 0
    %202 = vmatprep.subr.bf16.mxu0 0
    %203 = vmatpush1.bf16.msra.mxu0 0
    %204 = vmatprep.subr.bf16.mxu0 0
    %205 = vmatpush1.bf16.msra.mxu0 0
    %206 = vmatprep.subr.bf16.mxu0 0
    %207 = vmatpush1.bf16.msra.mxu0 0
    %208 = vmatprep.subr.bf16.mxu0 0
    %209 = vmatpush1.bf16.msra.mxu0 0
    %210 = vmatprep.subr.bf16.mxu0 0
    %211 = vmatpush1.bf16.msra.mxu0 0
    %212 = vmatprep.subr.bf16.mxu0 0
    %213 = vmatpush1.bf16.msra.mxu0 0
    %214 = vmatprep.subr.bf16.mxu0 0
    %215 = vmatpush1.bf16.msra.mxu0 0
    %216 = vmatprep.subr.bf16.mxu0 0
    %217 = vmatpush1.bf16.msra.mxu0 0
    %218 = vmatprep.subr.bf16.mxu0 0
    %219 = vmatpush1.bf16.msra.mxu0 0
    %220 = vmatprep.mubr.bf16.mxu0 0
    %221 = vmatmul.mubr.bf16.gmra.mrb[0].mxu0 %v186
    %v222 = vpop.f32.mrb[0].mxu0
    %v223 = vadd.f32 %v157, %v222
    %v224 = vpop.f32.mrb[0].mxu0
    %v225 = vadd.f32 %v161, %v224
    %v226 = vpop.f32.mrb[0].mxu0
    %v227 = vpop.f32.mrb[0].mxu0
    %228 = vdwg.mxu0
    %v231 = vcombine.low %v223, %v225
    %v233 = vunpack.c.l.s4 1983009808
    %v234 = vunpack.c.0.s8 %v233
    %v235 = vlaneseq
    %v236 = vshrl.u32 %v235, 7
    %v237 = vsub.s32 %v234, %v236
    %v238 = vrot.slane %v231, %v237
    %240 = vst [vmem:[#allocation8] sm:$0xf] %v238
    // Predicated region
    $region22: #{tpu_custom_call.1} parent=1 // pred_check
      _
    $region23: #{tpu_custom_call.1} parent=1 // pred_check_branch
      %242 = sbr.rel (0) target = $region25
    $region24: #{tpu_custom_call.1} parent=1 // pred_region
      %s244 = ssub.s32 64, 64
      %245 = vsyncadd [#allocation5], %s244
      %s247 = sshll.u32 [#allocation8], 4
      %s248 = int_to_ptr.vmem [resolvable:$true] %s247
      %250 = dma.vmem_to_hbm [thread:$0]  %s248, 64, %s3, [#allocation5]
    $region25: #{tpu_custom_call.1} parent=1 // pred_fallthru
      _
    // Predicated region
    $region26: #{tpu_custom_call.1} parent=1 // pred_check
      _
    $region27: #{tpu_custom_call.1} parent=1 // pred_check_branch
      %252 = sbr.rel (0) target = $region29
    $region28: #{tpu_custom_call.1} parent=1 // pred_region
      %253 = dma.done [#allocation5], 64
    $region29: #{tpu_custom_call.1} parent=1 // pred_fallthru
      _
    %254 = vsyncpa [#allocation4], 1
    %255 = vsyncpa [#allocation7], 1
    %256 = vsyncpa [#allocation5], 1

</llo_original>
